<compile_context>
chip_gen: v6e
topology: v6e:2x2x1
jax: 0.10.0
libtpu: 0.0.40
codegen_flags: <defaults>
</compile_context>

<pallas_src>
import functools
import math

import jax
import jax.numpy as jnp
from jax.experimental import pallas as pl
from jax.experimental.pallas import tpu as pltpu

BN_EPS = 1e-5
LANE = 128
SUBLANE = 8


def _round_up(n, m):
    return (n + m - 1) // m * m


def _softplus(x):
    # Numerically stable softplus: log(1 + exp(x)).
    return jnp.maximum(x, 0.0) + jnp.log1p(jnp.exp(-jnp.abs(x)))


def _bn_train(h, gamma, beta, inv_n, mask):
    """BatchNorm1d, training mode (biased batch variance, eps=1e-5).

    One-pass statistics (sum, sum-of-squares) folded into a single scale/shift.
    `inv_n` = 1 / true_batch.  `mask` is a (B_pad, 1) 0/1 float mask of valid
    rows, or None when no batch padding is present.
    """
    hm = h if mask is None else h * mask
    s1 = jnp.sum(hm, axis=0, keepdims=True)
    s2 = jnp.sum(hm * hm, axis=0, keepdims=True)
    mean = s1 * inv_n
    var = jnp.maximum(s2 * inv_n - mean * mean, 0.0)   # guard tiny negative cancellation
    scale = gamma * jax.lax.rsqrt(var + BN_EPS)
    shift = beta - mean * scale
    return h * scale + shift


def _forward_math(x, w, p, *, depth, in_pad, inv_n, mask):
    """Shared forward math; `x`, `w`, `p` may be Pallas Refs (kernel) or jnp
    arrays (reference) — both support the same static-slice indexing, so the
    kernel and the reference run bit-identical math.

    Weight slab `w` (bf16), row blocks: [W0 (in_pad,C)] + (depth-1)*[Wi (C,C)] + [Wf (C,C)]
    Param slab  `p` (f32),  rows:       [b0,g0,be0] + (depth-1)*[bi,gi,bei] + [bf]
    Every block is zero-padded to C = round_up(max(width, output_dim), 128) lanes.
    """
    C = w.shape[1]
    wo = 0  # weight-slab row offset (static Python int)
    po = 0  # param-slab row offset

    def wblock(rows):
        nonlocal wo
        blk = w[wo:wo + rows, :]
        wo += rows
        return blk

    def prow():
        nonlocal po
        r = p[po:po + 1, :]
        po += 1
        return r

    # Input layer: Linear -> ReLU -> BatchNorm1d
    W0, b0, g0, be0 = wblock(in_pad), prow(), prow(), prow()
    h = jnp.dot(x[...].astype(jnp.bfloat16), W0,
                preferred_element_type=jnp.float32) + b0
    h = _bn_train(jnp.maximum(h, 0.0), g0, be0, inv_n, mask)

    # (depth - 1) residual MLP blocks: h = h + BN(ReLU(h @ W + b))
    for _ in range(depth - 1):
        Wi, bi, gi, bei = wblock(C), prow(), prow(), prow()
        z = jnp.dot(h.astype(jnp.bfloat16), Wi,
                    preferred_element_type=jnp.float32) + bi
        z = _bn_train(jnp.maximum(z, 0.0), gi, bei, inv_n, mask)
        h = h + z

    # Output Linear -> softplus (Dirichlet parameters)
    Wf, bf = wblock(C), prow()
    logits = jnp.dot(h.astype(jnp.bfloat16), Wf,
                     preferred_element_type=jnp.float32) + bf
    return _softplus(logits)


def mlp_skip_dirichlet_kernel(depth, in_pad, inv_n, true_b, use_mask,
                              x_ref, w_ref, p_ref, out_ref):
    if use_mask:
        rows = jax.lax.broadcasted_iota(jnp.int32, (x_ref.shape[0], 1), 0)
        mask = (rows < true_b).astype(jnp.float32)
    else:
        mask = None
    out_ref[...] = _forward_math(x_ref, w_ref, p_ref, depth=depth,
                                 in_pad=in_pad, inv_n=inv_n, mask=mask)


# ----------------------------------------------------------------------------
# Parameter construction / packing (wrapper side)
# ----------------------------------------------------------------------------

def init_params(key, input_dim, width, depth, output_dim):
    """Synthetic parameters in "natural" layout (PyTorch defaults), with Linear
    weights pre-transposed to (in_features, out_features) and per-feature params
    as (1, features)."""
    params = []

    def linear(k, fan_in, fan_out):
        bound = 1.0 / math.sqrt(fan_in)
        kw, kb = jax.random.split(k)
        W = jax.random.uniform(kw, (fan_in, fan_out), jnp.float32, -bound, bound)
        b = jax.random.uniform(kb, (1, fan_out), jnp.float32, -bound, bound)
        return W, b

    keys = jax.random.split(key, depth + 1)

    W, b = linear(keys[0], input_dim, width)
    params += [W, b, jnp.ones((1, width), jnp.float32), jnp.zeros((1, width), jnp.float32)]
    for i in range(depth - 1):
        W, b = linear(keys[1 + i], width, width)
        params += [W, b, jnp.ones((1, width), jnp.float32), jnp.zeros((1, width), jnp.float32)]
    W, b = linear(keys[depth], width, output_dim)
    params += [W, b]
    return params


def pack_params(params, *, input_dim, width, depth, output_dim):
    """Pack the flat param list into (weight_slab bf16, bias/BN slab f32).

    Returns (w_slab, p_slab, in_pad, C).  Zero padding of weights, gamma and
    beta guarantees padded activation columns stay exactly 0 in every layer.
    """
    C = _round_up(max(width, output_dim), LANE)
    in_pad = _round_up(input_dim, LANE)

    def pad2(a, rows, cols):
        assert a.ndim == 2 and a.shape[0] <= rows and a.shape[1] <= cols
        return jnp.pad(a, ((0, rows - a.shape[0]), (0, cols - a.shape[1])))

    w_blocks, p_rows = [], []
    W, b, g, be = params[0], params[1], params[2], params[3]
    assert W.shape == (input_dim, width) and b.shape == (1, width)
    w_blocks.append(pad2(W, in_pad, C))
    p_rows += [pad2(b, 1, C), pad2(g, 1, C), pad2(be, 1, C)]
    idx = 4
    for _ in range(depth - 1):
        W, b, g, be = params[idx], params[idx + 1], params[idx + 2], params[idx + 3]
        assert W.shape == (width, width) and b.shape == (1, width)
        idx += 4
        w_blocks.append(pad2(W, C, C))
        p_rows += [pad2(b, 1, C), pad2(g, 1, C), pad2(be, 1, C)]
    W, b = params[idx], params[idx + 1]
    assert W.shape == (width, output_dim) and b.shape == (1, output_dim)
    w_blocks.append(pad2(W, C, C))
    p_rows.append(pad2(b, 1, C))

    w_slab = jnp.concatenate(w_blocks, axis=0).astype(jnp.bfloat16)
    p_slab = jnp.concatenate(p_rows, axis=0).astype(jnp.float32)
    return w_slab, p_slab, in_pad, C


# ----------------------------------------------------------------------------
# Forward wrappers
# ----------------------------------------------------------------------------

def mlp_skip_dirichlet_forward(x, w_slab, p_slab, *, input_dim, output_dim,
                               depth, in_pad, flatten_image=True):
    if flatten_image:
        x = x.reshape(-1, input_dim)
    x = x.astype(jnp.float32)
    B = x.shape[0]
    B_pad = _round_up(B, SUBLANE)
    C = w_slab.shape[1]
    assert w_slab.shape[0] == in_pad + depth * C and w_slab.dtype == jnp.bfloat16
    assert p_slab.shape == (3 * depth + 1, C) and p_slab.dtype == jnp.float32

    # Pad batch to a sublane multiple and features to the padded K; cast to bf16
    # (matmul input dtype) so the x DMA is half-size too.
    xp = jnp.pad(x, ((0, B_pad - B), (0, in_pad - input_dim))).astype(jnp.bfloat16)

    kernel = functools.partial(mlp_skip_dirichlet_kernel, depth, in_pad,
                               1.0 / B, B, B_pad != B)
    vmem = pl.BlockSpec(memory_space=pltpu.MemorySpace.VMEM)
    out = pl.pallas_call(
        kernel,
        out_shape=jax.ShapeDtypeStruct((B_pad, C), jnp.float32),   # lane-dense store
        in_specs=[vmem, vmem, vmem],
        out_specs=vmem,
    )(xp, w_slab, p_slab)
    # Slice away lane/row padding outside the kernel.
    return out[:B, :output_dim]


def reference_forward(x, w_slab, p_slab, *, input_dim, output_dim, depth,
                      in_pad, flatten_image=True):
    """Pure-JAX reference mirroring the kernel's exact numeric policy
    (same packed operands, bf16 matmul inputs, f32 accumulation/elementwise)."""
    if flatten_image:
        x = x.reshape(-1, input_dim)
    x = x.astype(jnp.float32)
    B = x.shape[0]
    B_pad = _round_up(B, SUBLANE)
    xp = jnp.pad(x, ((0, B_pad - B), (0, in_pad - input_dim))).astype(jnp.bfloat16)
    if B_pad != B:
        rows = jax.lax.broadcasted_iota(jnp.int32, (B_pad, 1), 0)
        mask = (rows < B).astype(jnp.float32)
    else:
        mask = None
    out = _forward_math(xp, w_slab, p_slab, depth=depth, in_pad=in_pad,
                        inv_n=1.0 / B, mask=mask)
    return out[:B, :output_dim]


if __name__ == "__main__":
    # Small config: image input (B, C, H, W) = (8, 2, 4, 8) flattened to input_dim=64.
    B, C_in, H, W = 8, 2, 4, 8
    input_dim = C_in * H * W       # 64
    width = 128
    depth = 3
    output_dim = 8
    flatten_image = True

    key = jax.random.PRNGKey(0)
    kx, kp = jax.random.split(key)
    x = jax.random.normal(kx, (B, C_in, H, W), jnp.float32)
    params = init_params(kp, input_dim, width, depth, output_dim)
    w_slab, p_slab, in_pad, C = pack_params(
        params, input_dim=input_dim, width=width, depth=depth, output_dim=output_dim)

    out = mlp_skip_dirichlet_forward(
        x, w_slab, p_slab, input_dim=input_dim, output_dim=output_dim,
        depth=depth, in_pad=in_pad, flatten_image=flatten_image)
    out = jax.block_until_ready(out)

    ref = reference_forward(
        x, w_slab, p_slab, input_dim=input_dim, output_dim=output_dim,
        depth=depth, in_pad=in_pad, flatten_image=flatten_image)
    ref = jax.block_until_ready(ref)

    assert out.shape == (B, output_dim)
    assert bool(jnp.all(out > 0.0))            # softplus -> positive Dirichlet params
    assert bool(jnp.all(jnp.isfinite(out)))
    assert jnp.allclose(out, ref, rtol=1e-4, atol=1e-4)

    print("KERNEL_OK")
</pallas_src>

<mosaic_0001>
module attributes {stable_mosaic.version = 11 : i64} {
  func.func @mlp_skip_dirichlet_kernel(%arg0: memref<8x128xbf16, #tpu.memory_space<vmem>>, %arg1: memref<512x128xbf16, #tpu.memory_space<vmem>>, %arg2: memref<10x128xf32, #tpu.memory_space<vmem>>, %arg3: memref<8x128xf32, #tpu.memory_space<vmem>>) attributes {dimension_semantics = [], scalar_prefetch = 0 : i64, scratch_operands = 0 : i64, tpu.core_type = #tpu.core_type<tc>} {
    %c0 = arith.constant 0 : index
    %c0_0 = arith.constant 0 : index
    %0 = vector.load %arg1[%c0, %c0_0] : memref<512x128xbf16, #tpu.memory_space<vmem>>, vector<128x128xbf16>
    %c0_1 = arith.constant 0 : index
    %c0_2 = arith.constant 0 : index
    %1 = vector.load %arg2[%c0_1, %c0_2] : memref<10x128xf32, #tpu.memory_space<vmem>>, vector<1x128xf32>
    %c1 = arith.constant 1 : index
    %c0_3 = arith.constant 0 : index
    %2 = vector.load %arg2[%c1, %c0_3] : memref<10x128xf32, #tpu.memory_space<vmem>>, vector<1x128xf32>
    %c2 = arith.constant 2 : index
    %c0_4 = arith.constant 0 : index
    %3 = vector.load %arg2[%c2, %c0_4] : memref<10x128xf32, #tpu.memory_space<vmem>>, vector<1x128xf32>
    %c0_5 = arith.constant 0 : index
    %c0_6 = arith.constant 0 : index
    %4 = vector.load %arg0[%c0_5, %c0_6] : memref<8x128xbf16, #tpu.memory_space<vmem>>, vector<8x128xbf16>
    %cst = arith.constant dense<0.000000e+00> : vector<8x128xf32>
    %5 = tpu.matmul %4, %0, %cst {dimension_numbers = #tpu.dot_dimension_numbers<[1], [0], [0], [1], [0, 0, 1, 1], [], []>} : vector<8x128xbf16>, vector<128x128xbf16>, vector<8x128xf32> -> vector<8x128xf32>
    %6 = vector.broadcast %1 : vector<1x128xf32> to vector<8x128xf32>
    %7 = arith.addf %5, %6 : vector<8x128xf32>
    %cst_7 = arith.constant 0.000000e+00 : f32
    %8 = vector.broadcast %cst_7 : f32 to vector<8x128xf32>
    %9 = arith.maximumf %7, %8 : vector<8x128xf32>
    %cst_8 = arith.constant dense<0.000000e+00> : vector<128xf32>
    %10 = vector.multi_reduction <add>, %9, %cst_8 [0] : vector<8x128xf32> to vector<128xf32>
    %11 = vector.shape_cast %10 : vector<128xf32> to vector<1x128xf32>
    %12 = arith.mulf %9, %9 : vector<8x128xf32>
    %cst_9 = arith.constant dense<0.000000e+00> : vector<128xf32>
    %13 = vector.multi_reduction <add>, %12, %cst_9 [0] : vector<8x128xf32> to vector<128xf32>
    %14 = vector.shape_cast %13 : vector<128xf32> to vector<1x128xf32>
    %cst_10 = arith.constant 1.250000e-01 : f32
    %15 = vector.broadcast %cst_10 : f32 to vector<1x128xf32>
    %16 = arith.mulf %11, %15 : vector<1x128xf32>
    %cst_11 = arith.constant 1.250000e-01 : f32
    %17 = vector.broadcast %cst_11 : f32 to vector<1x128xf32>
    %18 = arith.mulf %14, %17 : vector<1x128xf32>
    %19 = arith.mulf %16, %16 : vector<1x128xf32>
    %20 = arith.subf %18, %19 : vector<1x128xf32>
    %cst_12 = arith.constant 0.000000e+00 : f32
    %21 = vector.broadcast %cst_12 : f32 to vector<1x128xf32>
    %22 = arith.maximumf %20, %21 : vector<1x128xf32>
    %cst_13 = arith.constant 9.99999974E-6 : f32
    %23 = vector.broadcast %cst_13 : f32 to vector<1x128xf32>
    %24 = arith.addf %22, %23 : vector<1x128xf32>
    %25 = math.rsqrt %24 : vector<1x128xf32>
    %26 = arith.mulf %2, %25 : vector<1x128xf32>
    %27 = arith.mulf %16, %26 : vector<1x128xf32>
    %28 = arith.subf %3, %27 : vector<1x128xf32>
    %29 = vector.broadcast %26 : vector<1x128xf32> to vector<8x128xf32>
    %30 = arith.mulf %9, %29 : vector<8x128xf32>
    %31 = vector.broadcast %28 : vector<1x128xf32> to vector<8x128xf32>
    %32 = arith.addf %30, %31 : vector<8x128xf32>
    %c128 = arith.constant 128 : index
    %c0_14 = arith.constant 0 : index
    %33 = vector.load %arg1[%c128, %c0_14] : memref<512x128xbf16, #tpu.memory_space<vmem>>, vector<128x128xbf16>
    %c3 = arith.constant 3 : index
    %c0_15 = arith.constant 0 : index
    %34 = vector.load %arg2[%c3, %c0_15] : memref<10x128xf32, #tpu.memory_space<vmem>>, vector<1x128xf32>
    %c4 = arith.constant 4 : index
    %c0_16 = arith.constant 0 : index
    %35 = vector.load %arg2[%c4, %c0_16] : memref<10x128xf32, #tpu.memory_space<vmem>>, vector<1x128xf32>
    %c5 = arith.constant 5 : index
    %c0_17 = arith.constant 0 : index
    %36 = vector.load %arg2[%c5, %c0_17] : memref<10x128xf32, #tpu.memory_space<vmem>>, vector<1x128xf32>
    %37 = arith.truncf %32 : vector<8x128xf32> to vector<8x128xbf16>
    %cst_18 = arith.constant dense<0.000000e+00> : vector<8x128xf32>
    %38 = tpu.matmul %37, %33, %cst_18 {dimension_numbers = #tpu.dot_dimension_numbers<[1], [0], [0], [1], [0, 0, 1, 1], [], []>} : vector<8x128xbf16>, vector<128x128xbf16>, vector<8x128xf32> -> vector<8x128xf32>
    %39 = vector.broadcast %34 : vector<1x128xf32> to vector<8x128xf32>
    %40 = arith.addf %38, %39 : vector<8x128xf32>
    %cst_19 = arith.constant 0.000000e+00 : f32
    %41 = vector.broadcast %cst_19 : f32 to vector<8x128xf32>
    %42 = arith.maximumf %40, %41 : vector<8x128xf32>
    %cst_20 = arith.constant dense<0.000000e+00> : vector<128xf32>
    %43 = vector.multi_reduction <add>, %42, %cst_20 [0] : vector<8x128xf32> to vector<128xf32>
    %44 = vector.shape_cast %43 : vector<128xf32> to vector<1x128xf32>
    %45 = arith.mulf %42, %42 : vector<8x128xf32>
    %cst_21 = arith.constant dense<0.000000e+00> : vector<128xf32>
    %46 = vector.multi_reduction <add>, %45, %cst_21 [0] : vector<8x128xf32> to vector<128xf32>
    %47 = vector.shape_cast %46 : vector<128xf32> to vector<1x128xf32>
    %cst_22 = arith.constant 1.250000e-01 : f32
    %48 = vector.broadcast %cst_22 : f32 to vector<1x128xf32>
    %49 = arith.mulf %44, %48 : vector<1x128xf32>
    %cst_23 = arith.constant 1.250000e-01 : f32
    %50 = vector.broadcast %cst_23 : f32 to vector<1x128xf32>
    %51 = arith.mulf %47, %50 : vector<1x128xf32>
    %52 = arith.mulf %49, %49 : vector<1x128xf32>
    %53 = arith.subf %51, %52 : vector<1x128xf32>
    %cst_24 = arith.constant 0.000000e+00 : f32
    %54 = vector.broadcast %cst_24 : f32 to vector<1x128xf32>
    %55 = arith.maximumf %53, %54 : vector<1x128xf32>
    %cst_25 = arith.constant 9.99999974E-6 : f32
    %56 = vector.broadcast %cst_25 : f32 to vector<1x128xf32>
    %57 = arith.addf %55, %56 : vector<1x128xf32>
    %58 = math.rsqrt %57 : vector<1x128xf32>
    %59 = arith.mulf %35, %58 : vector<1x128xf32>
    %60 = arith.mulf %49, %59 : vector<1x128xf32>
    %61 = arith.subf %36, %60 : vector<1x128xf32>
    %62 = vector.broadcast %59 : vector<1x128xf32> to vector<8x128xf32>
    %63 = arith.mulf %42, %62 : vector<8x128xf32>
    %64 = vector.broadcast %61 : vector<1x128xf32> to vector<8x128xf32>
    %65 = arith.addf %63, %64 : vector<8x128xf32>
    %66 = arith.addf %32, %65 : vector<8x128xf32>
    %c256 = arith.constant 256 : index
    %c0_26 = arith.constant 0 : index
    %67 = vector.load %arg1[%c256, %c0_26] : memref<512x128xbf16, #tpu.memory_space<vmem>>, vector<128x128xbf16>
    %c6 = arith.constant 6 : index
    %c0_27 = arith.constant 0 : index
    %68 = vector.load %arg2[%c6, %c0_27] : memref<10x128xf32, #tpu.memory_space<vmem>>, vector<1x128xf32>
    %c7 = arith.constant 7 : index
    %c0_28 = arith.constant 0 : index
    %69 = vector.load %arg2[%c7, %c0_28] : memref<10x128xf32, #tpu.memory_space<vmem>>, vector<1x128xf32>
    %c8 = arith.constant 8 : index
    %c0_29 = arith.constant 0 : index
    %70 = vector.load %arg2[%c8, %c0_29] : memref<10x128xf32, #tpu.memory_space<vmem>>, vector<1x128xf32>
    %71 = arith.truncf %66 : vector<8x128xf32> to vector<8x128xbf16>
    %cst_30 = arith.constant dense<0.000000e+00> : vector<8x128xf32>
    %72 = tpu.matmul %71, %67, %cst_30 {dimension_numbers = #tpu.dot_dimension_numbers<[1], [0], [0], [1], [0, 0, 1, 1], [], []>} : vector<8x128xbf16>, vector<128x128xbf16>, vector<8x128xf32> -> vector<8x128xf32>
    %73 = vector.broadcast %68 : vector<1x128xf32> to vector<8x128xf32>
    %74 = arith.addf %72, %73 : vector<8x128xf32>
    %cst_31 = arith.constant 0.000000e+00 : f32
    %75 = vector.broadcast %cst_31 : f32 to vector<8x128xf32>
    %76 = arith.maximumf %74, %75 : vector<8x128xf32>
    %cst_32 = arith.constant dense<0.000000e+00> : vector<128xf32>
    %77 = vector.multi_reduction <add>, %76, %cst_32 [0] : vector<8x128xf32> to vector<128xf32>
    %78 = vector.shape_cast %77 : vector<128xf32> to vector<1x128xf32>
    %79 = arith.mulf %76, %76 : vector<8x128xf32>
    %cst_33 = arith.constant dense<0.000000e+00> : vector<128xf32>
    %80 = vector.multi_reduction <add>, %79, %cst_33 [0] : vector<8x128xf32> to vector<128xf32>
    %81 = vector.shape_cast %80 : vector<128xf32> to vector<1x128xf32>
    %cst_34 = arith.constant 1.250000e-01 : f32
    %82 = vector.broadcast %cst_34 : f32 to vector<1x128xf32>
    %83 = arith.mulf %78, %82 : vector<1x128xf32>
    %cst_35 = arith.constant 1.250000e-01 : f32
    %84 = vector.broadcast %cst_35 : f32 to vector<1x128xf32>
    %85 = arith.mulf %81, %84 : vector<1x128xf32>
    %86 = arith.mulf %83, %83 : vector<1x128xf32>
    %87 = arith.subf %85, %86 : vector<1x128xf32>
    %cst_36 = arith.constant 0.000000e+00 : f32
    %88 = vector.broadcast %cst_36 : f32 to vector<1x128xf32>
    %89 = arith.maximumf %87, %88 : vector<1x128xf32>
    %cst_37 = arith.constant 9.99999974E-6 : f32
    %90 = vector.broadcast %cst_37 : f32 to vector<1x128xf32>
    %91 = arith.addf %89, %90 : vector<1x128xf32>
    %92 = math.rsqrt %91 : vector<1x128xf32>
    %93 = arith.mulf %69, %92 : vector<1x128xf32>
    %94 = arith.mulf %83, %93 : vector<1x128xf32>
    %95 = arith.subf %70, %94 : vector<1x128xf32>
    %96 = vector.broadcast %93 : vector<1x128xf32> to vector<8x128xf32>
    %97 = arith.mulf %76, %96 : vector<8x128xf32>
    %98 = vector.broadcast %95 : vector<1x128xf32> to vector<8x128xf32>
    %99 = arith.addf %97, %98 : vector<8x128xf32>
    %100 = arith.addf %66, %99 : vector<8x128xf32>
    %c384 = arith.constant 384 : index
    %c0_38 = arith.constant 0 : index
    %101 = vector.load %arg1[%c384, %c0_38] : memref<512x128xbf16, #tpu.memory_space<vmem>>, vector<128x128xbf16>
    %c9 = arith.constant 9 : index
    %c0_39 = arith.constant 0 : index
    %102 = vector.load %arg2[%c9, %c0_39] : memref<10x128xf32, #tpu.memory_space<vmem>>, vector<1x128xf32>
    %103 = arith.truncf %100 : vector<8x128xf32> to vector<8x128xbf16>
    %cst_40 = arith.constant dense<0.000000e+00> : vector<8x128xf32>
    %104 = tpu.matmul %103, %101, %cst_40 {dimension_numbers = #tpu.dot_dimension_numbers<[1], [0], [0], [1], [0, 0, 1, 1], [], []>} : vector<8x128xbf16>, vector<128x128xbf16>, vector<8x128xf32> -> vector<8x128xf32>
    %105 = vector.broadcast %102 : vector<1x128xf32> to vector<8x128xf32>
    %106 = arith.addf %104, %105 : vector<8x128xf32>
    %cst_41 = arith.constant 0.000000e+00 : f32
    %107 = vector.broadcast %cst_41 : f32 to vector<8x128xf32>
    %108 = arith.maximumf %106, %107 : vector<8x128xf32>
    %109 = math.absf %106 : vector<8x128xf32>
    %cst_42 = arith.constant 0.000000e+00 : f32
    %110 = vector.broadcast %cst_42 : f32 to vector<8x128xf32>
    %111 = arith.subf %110, %109 : vector<8x128xf32>
    %112 = math.exp %111 : vector<8x128xf32>
    %113 = math.log1p %112 : vector<8x128xf32>
    %114 = arith.addf %108, %113 : vector<8x128xf32>
    %c0_43 = arith.constant 0 : index
    %c0_44 = arith.constant 0 : index
    %115 = vector.load %arg3[%c0_43, %c0_44] : memref<8x128xf32, #tpu.memory_space<vmem>>, vector<8x128xf32>
    tpu.vector_store %arg3[%c0_43, %c0_44], %114 {strides = array<i32>} : memref<8x128xf32, #tpu.memory_space<vmem>>, vector<8x128xf32>,
    return
  }
}

</mosaic_0001>

<llo_original>
// kernel: tpu_custom_call.1
$region0: #{tpu_custom_call.1}
  #allocation0 [shape = 'u32[]', space=smem, size = 0x4, offset = 0x4, fixed_abs, tag = 'smem constant byte address 0x4 - core index']
  #allocation1 [shape = 'u32[144,128]{1,0:T(1,128)}', space=vmem, size = 0x12000, scoped, tag = 'internal scratch']
  %s0 = inlined_call_operand.hbm [shape: bf16[8,128], index: 0, kind: input, shape index: {}]
  %s1 = inlined_call_operand.hbm [shape: bf16[512,128], index: 1, kind: input, shape index: {}]
  %s2 = inlined_call_operand.hbm [shape: f32[10,128], index: 2, kind: input, shape index: {}]
  %s3 = inlined_call_operand.hbm [shape: f32[8,128], index: 3, kind: output, shape index: {}]
  %s4 = sld [smem:[#allocation0]]
  $region34: #{tpu_custom_call.1} parent=0
    _
  %s6 = ssub.s32 1, %s4
  %s7 = scalar_select 0, %s6, %s4
  $region1: #{tpu_custom_call.1} parent=0
    #allocation2 [shape = 'u8[2048]{0}', space=vmem, size = 0x800, scoped, tag = 'input window, operand 0, single buffered']
    #allocation3 [shape = 's32[1]{0}', space=sflag, size = 0x4, scoped, tag = 'scoped memory for tpu_custom_call.1']
    #allocation4 [shape = 's32[1]{0}', space=sflag, size = 0x4, scoped, tag = 'scoped memory for tpu_custom_call.1']
    #allocation5 [shape = 'u8[131072]{0}', space=vmem, size = 0x20000, scoped, tag = 'input window, operand 1, single buffered']
    #allocation6 [shape = 's32[1]{0}', space=sflag, size = 0x4, scoped, tag = 'scoped memory for tpu_custom_call.1']
    #allocation7 [shape = 'u8[8192]{0}', space=vmem, size = 0x2000, scoped, tag = 'input window, operand 2, single buffered']
    #allocation8 [shape = 'u8[4096]{0}', space=vmem, size = 0x1000, scoped, tag = 'output window, operand 0, single buffered']
    %8 = vsyncpa [#allocation3], 0
    %9 = vsyncpa [#allocation6], 0
    %10 = vsyncpa [#allocation4], 0
    // Predicated region
    $region2: #{tpu_custom_call.1} parent=1 // pred_check
      _
    $region3: #{tpu_custom_call.1} parent=1 // pred_check_branch
      %12 = sbr.rel (0) target = $region5
    $region4: #{tpu_custom_call.1} parent=1 // pred_region
      %s14 = ssub.s32 64, 64
      %15 = vsyncadd [#allocation3], %s14
      %s17 = sshll.u32 [#allocation2], 4
      %s18 = int_to_ptr.vmem [resolvable:$true] %s17
      %20 = dma.hbm_to_vmem [thread:$0]  %s0, 64, %s18, [#allocation3]
    $region5: #{tpu_custom_call.1} parent=1 // pred_fallthru
      _
    // Predicated region
    $region6: #{tpu_custom_call.1} parent=1 // pred_check
      _
    $region7: #{tpu_custom_call.1} parent=1 // pred_check_branch
      %22 = sbr.rel (0) target = $region9
    $region8: #{tpu_custom_call.1} parent=1 // pred_region
      %s24 = ssub.s32 4096, 4096
      %25 = vsyncadd [#allocation6], %s24
      %s26 = sshll.u32 [#allocation5], 4
      %s27 = int_to_ptr.vmem [resolvable:$true] %s26
      %32 = dma.hbm_to_vmem [thread:$0]  %s1, 4096, %s27, [#allocation6], 64, 64, 4
    $region9: #{tpu_custom_call.1} parent=1 // pred_fallthru
      _
    // Predicated region
    $region10: #{tpu_custom_call.1} parent=1 // pred_check
      _
    $region11: #{tpu_custom_call.1} parent=1 // pred_check_branch
      %34 = sbr.rel (0) target = $region13
    $region12: #{tpu_custom_call.1} parent=1 // pred_region
      %s36 = ssub.s32 256, 256
      %37 = vsyncadd [#allocation6], %s36
      %s38 = sshll.u32 [#allocation7], 4
      %s39 = int_to_ptr.vmem [resolvable:$true] %s38
      %44 = dma.hbm_to_vmem [thread:$0]  %s2, 256, %s39, [#allocation6], 128, 128, 8
    $region13: #{tpu_custom_call.1} parent=1 // pred_fallthru
      _
    // Predicated region
    $region14: #{tpu_custom_call.1} parent=1 // pred_check
      _
    $region15: #{tpu_custom_call.1} parent=1 // pred_check_branch
      %46 = sbr.rel (0) target = $region17
    $region16: #{tpu_custom_call.1} parent=1 // pred_region
      %47 = dma.done [#allocation3], 64
    $region17: #{tpu_custom_call.1} parent=1 // pred_fallthru
      _
    // Predicated region
    $region18: #{tpu_custom_call.1} parent=1 // pred_check
      _
    $region19: #{tpu_custom_call.1} parent=1 // pred_check_branch
      %49 = sbr.rel (0) target = $region21
    $region20: #{tpu_custom_call.1} parent=1 // pred_region
      %50 = dma.done [#allocation6], 4096
    $region21: #{tpu_custom_call.1} parent=1 // pred_fallthru
      _
    // Predicated region
    $region22: #{tpu_custom_call.1} parent=1 // pred_check
      _
    $region23: #{tpu_custom_call.1} parent=1 // pred_check_branch
      %52 = sbr.rel (0) target = $region25
    $region24: #{tpu_custom_call.1} parent=1 // pred_region
      %53 = dma.done [#allocation6], 256
    $region25: #{tpu_custom_call.1} parent=1 // pred_fallthru
      _
    %v55 = vld [vmem:[#allocation5] sm:$0xf]
    %v56 = vld [vmem:[#allocation5 + $0x4] sm:$0xf]
    %v57 = vld [vmem:[#allocation5 + $0x8] sm:$0xf]
    %v58 = vld [vmem:[#allocation5 + $0xc] sm:$0xf]
    %v59 = vld [vmem:[#allocation5 + $0x10] sm:$0xf]
    %v60 = vld [vmem:[#allocation5 + $0x14] sm:$0xf]
    %v61 = vld [vmem:[#allocation5 + $0x18] sm:$0xf]
    %v62 = vld [vmem:[#allocation5 + $0x1c] sm:$0xf]
    %v63 = vld [vmem:[#allocation5 + $0x20] sm:$0xf]
    %v64 = vld [vmem:[#allocation5 + $0x24] sm:$0xf]
    %v65 = vld [vmem:[#allocation5 + $0x28] sm:$0xf]
    %v66 = vld [vmem:[#allocation5 + $0x2c] sm:$0xf]
    %v67 = vld [vmem:[#allocation5 + $0x30] sm:$0xf]
    %v68 = vld [vmem:[#allocation5 + $0x34] sm:$0xf]
    %v69 = vld [vmem:[#allocation5 + $0x38] sm:$0xf]
    %v70 = vld [vmem:[#allocation5 + $0x3c] sm:$0xf]
    %v71 = vld [vmem:[#allocation7] sm:$0x1]
    %v72 = vld [vmem:[#allocation7 + $0x1] sm:$0x1]
    %v73 = vld [vmem:[#allocation7 + $0x2] sm:$0x1]
    %v74 = vld [vmem:[#allocation2] sm:$0xf]
    %v75 = vlaneseq
    %v76 = vshrl.u32 %v75, 7
    %v77 = vsub.s32 0, %v76
    %v78 = vrot.slane %v71, %v77
    %v95 = vunpack.c.l.b16 %v55
    %v96 = vunpack.c.l.b16 %v56
    %v97 = vunpack.c.l.b16 %v57
    %v98 = vunpack.c.l.b16 %v58
    %v99 = vunpack.c.l.b16 %v59
    %v100 = vunpack.c.l.b16 %v60
    %v101 = vunpack.c.l.b16 %v61
    %v102 = vunpack.c.l.b16 %v62
    %v103 = vunpack.c.l.b16 %v63
    %v104 = vunpack.c.l.b16 %v64
    %v105 = vunpack.c.l.b16 %v65
    %v106 = vunpack.c.l.b16 %v66
    %v107 = vunpack.c.l.b16 %v67
    %v108 = vunpack.c.l.b16 %v68
    %v109 = vunpack.c.l.b16 %v69
    %v110 = vunpack.c.l.b16 %v70
    %v111 = vpack.c.b16 %v96, %v95
    %v112 = vpack.c.b16 %v98, %v97
    %v113 = vpack.c.b16 %v100, %v99
    %v114 = vpack.c.b16 %v102, %v101
    %v115 = vpack.c.b16 %v104, %v103
    %v116 = vpack.c.b16 %v106, %v105
    %v117 = vpack.c.b16 %v108, %v107
    %v118 = vpack.c.b16 %v110, %v109
    %127 = vmatprep.subr.bf16.mxu0 0
    %128 = vmatpush1.bf16.msra.mxu0 %v118
    %129 = vmatprep.subr.bf16.mxu0 0
    %130 = vmatpush1.bf16.msra.mxu0 %v117
    %131 = vmatprep.subr.bf16.mxu0 0
    %132 = vmatpush1.bf16.msra.mxu0 %v116
    %133 = vmatprep.subr.bf16.mxu0 0
    %134 = vmatpush1.bf16.msra.mxu0 %v115
    %135 = vmatprep.subr.bf16.mxu0 0
    %136 = vmatpush1.bf16.msra.mxu0 %v114
    %137 = vmatprep.subr.bf16.mxu0 0
    %138 = vmatpush1.bf16.msra.mxu0 %v113
    %139 = vmatprep.subr.bf16.mxu0 0
    %140 = vmatpush1.bf16.msra.mxu0 %v112
    %141 = vmatprep.subr.bf16.mxu0 0
    %142 = vmatpush1.bf16.msra.mxu0 %v111
    %143 = vmatprep.subr.bf16.mxu0 0
    %144 = vmatpush2.bf16.msra.mxu0 0
    %145 = vmatprep.subr.bf16.mxu0 0
    %146 = vmatpush2.bf16.msra.mxu0 0
    %147 = vmatprep.subr.bf16.mxu0 0
    %148 = vmatpush2.bf16.msra.mxu0 0
    %149 = vmatprep.subr.bf16.mxu0 0
    %150 = vmatpush2.bf16.msra.mxu0 0
    %151 = vmatprep.subr.bf16.mxu0 0
    %152 = vmatpush2.bf16.msra.mxu0 0
    %153 = vmatprep.subr.bf16.mxu0 0
    %154 = vmatpush2.bf16.msra.mxu0 0
    %155 = vmatprep.subr.bf16.mxu0 0
    %156 = vmatpush2.bf16.msra.mxu0 0
    %157 = vmatprep.subr.bf16.mxu0 0
    %158 = vmatpush2.bf16.msra.mxu0 0
    %159 = vmatprep.mubr.bf16.mxu0 0
    %160 = vmatmul.mubr.bf16.gmra.mxu0 %v74
    %v161 = vpop.f32.mrf.mxu0
    %v162 = vadd.f32 %v78, %v161
    %v163 = vpop.f32.mrf.mxu0
    %v164 = vpop.f32.mrf.mxu0
    %v165 = vpop.f32.mrf.mxu0
    %166 = vdwg.mxu0
    %v167 = vmax.f32 %v162, 0.0
    %v168 = vrot.slane %v167, 4
    %v169 = vadd.f32 %v167, %v168
    %v170 = vrot.slane %v169, 2
    %v171 = vadd.f32 %v169, %v170
    %v172 = vrot.slane %v171, 1
    %v173 = vadd.f32 %v171, %v172
    %v174 = vmul.f32 %v167, %v167
    %v175 = vrot.slane %v174, 4
    %v176 = vadd.f32 %v174, %v175
    %v177 = vrot.slane %v176, 2
    %v178 = vadd.f32 %v176, %v177
    %v179 = vrot.slane %v178, 1
    %v180 = vadd.f32 %v178, %v179
    %v181 = vmul.f32 %v173, 0.125
    %v182 = vmul.f32 %v180, 0.125
    %v183 = vmul.f32 %v181, %v181
    %v184 = vsub.f32 %v182, %v183
    %v185 = vmax.f32 %v184, 0.0
    %v186 = vadd.f32 %v185, 1e-05
    %v187 = vrsqrt.pop %v186
    %v188 = vmul.f32 %v72, %v187
    %v189 = vmul.f32 %v181, %v188
    %v190 = vsub.f32 %v73, %v189
    %v191 = vlaneseq
    %v192 = vshrl.u32 %v191, 7
    %v193 = vsub.s32 0, %v192
    %v194 = vrot.slane %v188, %v193
    %v195 = vmul.f32 %v167, %v194
    %v196 = vlaneseq
    %v197 = vshrl.u32 %v196, 7
    %v198 = vsub.s32 0, %v197
    %v199 = vrot.slane %v190, %v198
    %v200 = vadd.f32 %v195, %v199
    %v201 = vld [vmem:[#allocation5 + $0x40] sm:$0xf]
    %v202 = vld [vmem:[#allocation5 + $0x44] sm:$0xf]
    %v203 = vld [vmem:[#allocation5 + $0x48] sm:$0xf]
    %v204 = vld [vmem:[#allocation5 + $0x4c] sm:$0xf]
    %v205 = vld [vmem:[#allocation5 + $0x50] sm:$0xf]
    %v206 = vld [vmem:[#allocation5 + $0x54] sm:$0xf]
    %v207 = vld [vmem:[#allocation5 + $0x58] sm:$0xf]
    %v208 = vld [vmem:[#allocation5 + $0x5c] sm:$0xf]
    %v209 = vld [vmem:[#allocation5 + $0x60] sm:$0xf]
    %v210 = vld [vmem:[#allocation5 + $0x64] sm:$0xf]
    %v211 = vld [vmem:[#allocation5 + $0x68] sm:$0xf]
    %v212 = vld [vmem:[#allocation5 + $0x6c] sm:$0xf]
    %v213 = vld [vmem:[#allocation5 + $0x70] sm:$0xf]
    %v214 = vld [vmem:[#allocation5 + $0x74] sm:$0xf]
    %v215 = vld [vmem:[#allocation5 + $0x78] sm:$0xf]
    %v216 = vld [vmem:[#allocation5 + $0x7c] sm:$0xf]
    %v217 = vld [vmem:[#allocation7 + $0x3] sm:$0x1]
    %v218 = vld [vmem:[#allocation7 + $0x4] sm:$0x1]
    %v219 = vld [vmem:[#allocation7 + $0x5] sm:$0x1]
    %v220 = vpack.c.bf16 %v200, %v200
    %v221 = vlaneseq
    %v222 = vshrl.u32 %v221, 7
    %v223 = vsub.s32 0, %v222
    %v224 = vrot.slane %v217, %v223
    %v241 = vunpack.c.l.b16 %v201
    %v242 = vunpack.c.l.b16 %v202
    %v243 = vunpack.c.l.b16 %v203
    %v244 = vunpack.c.l.b16 %v204
    %v245 = vunpack.c.l.b16 %v205
    %v246 = vunpack.c.l.b16 %v206
    %v247 = vunpack.c.l.b16 %v207
    %v248 = vunpack.c.l.b16 %v208
    %v249 = vunpack.c.l.b16 %v209
    %v250 = vunpack.c.l.b16 %v210
    %v251 = vunpack.c.l.b16 %v211
    %v252 = vunpack.c.l.b16 %v212
    %v253 = vunpack.c.l.b16 %v213
    %v254 = vunpack.c.l.b16 %v214
    %v255 = vunpack.c.l.b16 %v215
    %v256 = vunpack.c.l.b16 %v216
    %v257 = vpack.c.b16 %v242, %v241
    %v258 = vpack.c.b16 %v244, %v243
    %v259 = vpack.c.b16 %v246, %v245
    %v260 = vpack.c.b16 %v248, %v247
    %v261 = vpack.c.b16 %v250, %v249
    %v262 = vpack.c.b16 %v252, %v251
    %v263 = vpack.c.b16 %v254, %v253
    %v264 = vpack.c.b16 %v256, %v255
    %273 = vmatprep.subr.bf16.mxu0 0
    %274 = vmatpush1.bf16.msra.mxu0 %v264
    %275 = vmatprep.subr.bf16.mxu0 0
    %276 = vmatpush1.bf16.msra.mxu0 %v263
    %277 = vmatprep.subr.bf16.mxu0 0
    %278 = vmatpush1.bf16.msra.mxu0 %v262
    %279 = vmatprep.subr.bf16.mxu0 0
    %280 = vmatpush1.bf16.msra.mxu0 %v261
    %281 = vmatprep.subr.bf16.mxu0 0
    %282 = vmatpush1.bf16.msra.mxu0 %v260
    %283 = vmatprep.subr.bf16.mxu0 0
    %284 = vmatpush1.bf16.msra.mxu0 %v259
    %285 = vmatprep.subr.bf16.mxu0 0
    %286 = vmatpush1.bf16.msra.mxu0 %v258
    %287 = vmatprep.subr.bf16.mxu0 0
    %288 = vmatpush1.bf16.msra.mxu0 %v257
    %289 = vmatprep.subr.bf16.mxu0 0
    %290 = vmatpush2.bf16.msra.mxu0 0
    %291 = vmatprep.subr.bf16.mxu0 0
    %292 = vmatpush2.bf16.msra.mxu0 0
    %293 = vmatprep.subr.bf16.mxu0 0
    %294 = vmatpush2.bf16.msra.mxu0 0
    %295 = vmatprep.subr.bf16.mxu0 0
    %296 = vmatpush2.bf16.msra.mxu0 0
    %297 = vmatprep.subr.bf16.mxu0 0
    %298 = vmatpush2.bf16.msra.mxu0 0
    %299 = vmatprep.subr.bf16.mxu0 0
    %300 = vmatpush2.bf16.msra.mxu0 0
    %301 = vmatprep.subr.bf16.mxu0 0
    %302 = vmatpush2.bf16.msra.mxu0 0
    %303 = vmatprep.subr.bf16.mxu0 0
    %304 = vmatpush2.bf16.msra.mxu0 0
    %305 = vmatprep.mubr.bf16.mxu0 0
    %306 = vmatmul.mubr.bf16.gmra.mxu0 %v220
    %v307 = vpop.f32.mrf.mxu0
    %v308 = vadd.f32 %v224, %v307
    %v309 = vpop.f32.mrf.mxu0
    %v310 = vpop.f32.mrf.mxu0
    %v311 = vpop.f32.mrf.mxu0
    %312 = vdwg.mxu0
    %v313 = vmax.f32 %v308, 0.0
    %v314 = vrot.slane %v313, 4
    %v315 = vadd.f32 %v313, %v314
    %v316 = vrot.slane %v315, 2
    %v317 = vadd.f32 %v315, %v316
    %v318 = vrot.slane %v317, 1
    %v319 = vadd.f32 %v317, %v318
    %v320 = vmul.f32 %v313, %v313
    %v321 = vrot.slane %v320, 4
    %v322 = vadd.f32 %v320, %v321
    %v323 = vrot.slane %v322, 2
    %v324 = vadd.f32 %v322, %v323
    %v325 = vrot.slane %v324, 1
    %v326 = vadd.f32 %v324, %v325
    %v327 = vmul.f32 %v319, 0.125
    %v328 = vmul.f32 %v326, 0.125
    %v329 = vmul.f32 %v327, %v327
    %v330 = vsub.f32 %v328, %v329
    %v331 = vmax.f32 %v330, 0.0
    %v332 = vadd.f32 %v331, 1e-05
    %v333 = vrsqrt.pop %v332
    %v334 = vmul.f32 %v218, %v333
    %v335 = vmul.f32 %v327, %v334
    %v336 = vsub.f32 %v219, %v335
    %v337 = vlaneseq
    %v338 = vshrl.u32 %v337, 7
    %v339 = vsub.s32 0, %v338
    %v340 = vrot.slane %v334, %v339
    %v341 = vmul.f32 %v313, %v340
    %v342 = vlaneseq
    %v343 = vshrl.u32 %v342, 7
    %v344 = vsub.s32 0, %v343
    %v345 = vrot.slane %v336, %v344
    %v346 = vadd.f32 %v341, %v345
    %v347 = vadd.f32 %v200, %v346
    %v348 = vld [vmem:[#allocation5 + $0x80] sm:$0xf]
    %v349 = vld [vmem:[#allocation5 + $0x84] sm:$0xf]
    %v350 = vld [vmem:[#allocation5 + $0x88] sm:$0xf]
    %v351 = vld [vmem:[#allocation5 + $0x8c] sm:$0xf]
    %v352 = vld [vmem:[#allocation5 + $0x90] sm:$0xf]
    %v353 = vld [vmem:[#allocation5 + $0x94] sm:$0xf]
    %v354 = vld [vmem:[#allocation5 + $0x98] sm:$0xf]
    %v355 = vld [vmem:[#allocation5 + $0x9c] sm:$0xf]
    %v356 = vld [vmem:[#allocation5 + $0xa0] sm:$0xf]
    %v357 = vld [vmem:[#allocation5 + $0xa4] sm:$0xf]
    %v358 = vld [vmem:[#allocation5 + $0xa8] sm:$0xf]
    %v359 = vld [vmem:[#allocation5 + $0xac] sm:$0xf]
    %v360 = vld [vmem:[#allocation5 + $0xb0] sm:$0xf]
    %v361 = vld [vmem:[#allocation5 + $0xb4] sm:$0xf]
    %v362 = vld [vmem:[#allocation5 + $0xb8] sm:$0xf]
    %v363 = vld [vmem:[#allocation5 + $0xbc] sm:$0xf]
    %v364 = vld [vmem:[#allocation7 + $0x6] sm:$0x1]
    %v365 = vld [vmem:[#allocation7 + $0x7] sm:$0x1]
    %v366 = vld [vmem:[#allocation7 + $0x8] sm:$0x1]
    %v367 = vpack.c.bf16 %v347, %v347
    %v368 = vlaneseq
    %v369 = vshrl.u32 %v368, 7
    %v370 = vsub.s32 0, %v369
    %v371 = vrot.slane %v364, %v370
    %v388 = vunpack.c.l.b16 %v348
    %v389 = vunpack.c.l.b16 %v349
    %v390 = vunpack.c.l.b16 %v350
    %v391 = vunpack.c.l.b16 %v351
    %v392 = vunpack.c.l.b16 %v352
    %v393 = vunpack.c.l.b16 %v353
    %v394 = vunpack.c.l.b16 %v354
    %v395 = vunpack.c.l.b16 %v355
    %v396 = vunpack.c.l.b16 %v356
    %v397 = vunpack.c.l.b16 %v357
    %v398 = vunpack.c.l.b16 %v358
    %v399 = vunpack.c.l.b16 %v359
    %v400 = vunpack.c.l.b16 %v360
    %v401 = vunpack.c.l.b16 %v361
    %v402 = vunpack.c.l.b16 %v362
    %v403 = vunpack.c.l.b16 %v363
    %v404 = vpack.c.b16 %v389, %v388
    %v405 = vpack.c.b16 %v391, %v390
    %v406 = vpack.c.b16 %v393, %v392
    %v407 = vpack.c.b16 %v395, %v394
    %v408 = vpack.c.b16 %v397, %v396
    %v409 = vpack.c.b16 %v399, %v398
    %v410 = vpack.c.b16 %v401, %v400
    %v411 = vpack.c.b16 %v403, %v402
    %420 = vmatprep.subr.bf16.mxu0 0
    %421 = vmatpush1.bf16.msra.mxu0 %v411
    %422 = vmatprep.subr.bf16.mxu0 0
    %423 = vmatpush1.bf16.msra.mxu0 %v410
    %424 = vmatprep.subr.bf16.mxu0 0
    %425 = vmatpush1.bf16.msra.mxu0 %v409
    %426 = vmatprep.subr.bf16.mxu0 0
    %427 = vmatpush1.bf16.msra.mxu0 %v408
    %428 = vmatprep.subr.bf16.mxu0 0
    %429 = vmatpush1.bf16.msra.mxu0 %v407
    %430 = vmatprep.subr.bf16.mxu0 0
    %431 = vmatpush1.bf16.msra.mxu0 %v406
    %432 = vmatprep.subr.bf16.mxu0 0
    %433 = vmatpush1.bf16.msra.mxu0 %v405
    %434 = vmatprep.subr.bf16.mxu0 0
    %435 = vmatpush1.bf16.msra.mxu0 %v404
    %436 = vmatprep.subr.bf16.mxu0 0
    %437 = vmatpush2.bf16.msra.mxu0 0
    %438 = vmatprep.subr.bf16.mxu0 0
    %439 = vmatpush2.bf16.msra.mxu0 0
    %440 = vmatprep.subr.bf16.mxu0 0
    %441 = vmatpush2.bf16.msra.mxu0 0
    %442 = vmatprep.subr.bf16.mxu0 0
    %443 = vmatpush2.bf16.msra.mxu0 0
    %444 = vmatprep.subr.bf16.mxu0 0
    %445 = vmatpush2.bf16.msra.mxu0 0
    %446 = vmatprep.subr.bf16.mxu0 0
    %447 = vmatpush2.bf16.msra.mxu0 0
    %448 = vmatprep.subr.bf16.mxu0 0
    %449 = vmatpush2.bf16.msra.mxu0 0
    %450 = vmatprep.subr.bf16.mxu0 0
    %451 = vmatpush2.bf16.msra.mxu0 0
    %452 = vmatprep.mubr.bf16.mxu0 0
    %453 = vmatmul.mubr.bf16.gmra.mxu0 %v367
    %v454 = vpop.f32.mrf.mxu0
    %v455 = vadd.f32 %v371, %v454
    %v456 = vpop.f32.mrf.mxu0
    %v457 = vpop.f32.mrf.mxu0
    %v458 = vpop.f32.mrf.mxu0
    %459 = vdwg.mxu0
    %v460 = vmax.f32 %v455, 0.0
    %v461 = vrot.slane %v460, 4
    %v462 = vadd.f32 %v460, %v461
    %v463 = vrot.slane %v462, 2
    %v464 = vadd.f32 %v462, %v463
    %v465 = vrot.slane %v464, 1
    %v466 = vadd.f32 %v464, %v465
    %v467 = vmul.f32 %v460, %v460
    %v468 = vrot.slane %v467, 4
    %v469 = vadd.f32 %v467, %v468
    %v470 = vrot.slane %v469, 2
    %v471 = vadd.f32 %v469, %v470
    %v472 = vrot.slane %v471, 1
    %v473 = vadd.f32 %v471, %v472
    %v474 = vmul.f32 %v466, 0.125
    %v475 = vmul.f32 %v473, 0.125
    %v476 = vmul.f32 %v474, %v474
    %v477 = vsub.f32 %v475, %v476
    %v478 = vmax.f32 %v477, 0.0
    %v479 = vadd.f32 %v478, 1e-05
    %v480 = vrsqrt.pop %v479
    %v481 = vmul.f32 %v365, %v480
    %v482 = vmul.f32 %v474, %v481
    %v483 = vsub.f32 %v366, %v482
    %v484 = vlaneseq
    %v485 = vshrl.u32 %v484, 7
    %v486 = vsub.s32 0, %v485
    %v487 = vrot.slane %v481, %v486
    %v488 = vmul.f32 %v460, %v487
    %v489 = vlaneseq
    %v490 = vshrl.u32 %v489, 7
    %v491 = vsub.s32 0, %v490
    %v492 = vrot.slane %v483, %v491
    %v493 = vadd.f32 %v488, %v492
    %v494 = vadd.f32 %v347, %v493
    %v495 = vld [vmem:[#allocation5 + $0xc0] sm:$0xf]
    %v496 = vld [vmem:[#allocation5 + $0xc4] sm:$0xf]
    %v497 = vld [vmem:[#allocation5 + $0xc8] sm:$0xf]
    %v498 = vld [vmem:[#allocation5 + $0xcc] sm:$0xf]
    %v499 = vld [vmem:[#allocation5 + $0xd0] sm:$0xf]
    %v500 = vld [vmem:[#allocation5 + $0xd4] sm:$0xf]
    %v501 = vld [vmem:[#allocation5 + $0xd8] sm:$0xf]
    %v502 = vld [vmem:[#allocation5 + $0xdc] sm:$0xf]
    %v503 = vld [vmem:[#allocation5 + $0xe0] sm:$0xf]
    %v504 = vld [vmem:[#allocation5 + $0xe4] sm:$0xf]
    %v505 = vld [vmem:[#allocation5 + $0xe8] sm:$0xf]
    %v506 = vld [vmem:[#allocation5 + $0xec] sm:$0xf]
    %v507 = vld [vmem:[#allocation5 + $0xf0] sm:$0xf]
    %v508 = vld [vmem:[#allocation5 + $0xf4] sm:$0xf]
    %v509 = vld [vmem:[#allocation5 + $0xf8] sm:$0xf]
    %v510 = vld [vmem:[#allocation5 + $0xfc] sm:$0xf]
    %v511 = vld [vmem:[#allocation7 + $0x9] sm:$0x1]
    %v512 = vpack.c.bf16 %v494, %v494
    %v513 = vlaneseq
    %v514 = vshrl.u32 %v513, 7
    %v515 = vsub.s32 0, %v514
    %v516 = vrot.slane %v511, %v515
    %v533 = vunpack.c.l.b16 %v495
    %v534 = vunpack.c.l.b16 %v496
    %v535 = vunpack.c.l.b16 %v497
    %v536 = vunpack.c.l.b16 %v498
    %v537 = vunpack.c.l.b16 %v499
    %v538 = vunpack.c.l.b16 %v500
    %v539 = vunpack.c.l.b16 %v501
    %v540 = vunpack.c.l.b16 %v502
    %v541 = vunpack.c.l.b16 %v503
    %v542 = vunpack.c.l.b16 %v504
    %v543 = vunpack.c.l.b16 %v505
    %v544 = vunpack.c.l.b16 %v506
    %v545 = vunpack.c.l.b16 %v507
    %v546 = vunpack.c.l.b16 %v508
    %v547 = vunpack.c.l.b16 %v509
    %v548 = vunpack.c.l.b16 %v510
    %v549 = vpack.c.b16 %v534, %v533
    %v550 = vpack.c.b16 %v536, %v535
    %v551 = vpack.c.b16 %v538, %v537
    %v552 = vpack.c.b16 %v540, %v539
    %v553 = vpack.c.b16 %v542, %v541
    %v554 = vpack.c.b16 %v544, %v543
    %v555 = vpack.c.b16 %v546, %v545
    %v556 = vpack.c.b16 %v548, %v547
    %565 = vmatprep.subr.bf16.mxu0 0
    %566 = vmatpush1.bf16.msra.mxu0 %v556
    %567 = vmatprep.subr.bf16.mxu0 0
    %568 = vmatpush1.bf16.msra.mxu0 %v555
    %569 = vmatprep.subr.bf16.mxu0 0
    %570 = vmatpush1.bf16.msra.mxu0 %v554
    %571 = vmatprep.subr.bf16.mxu0 0
    %572 = vmatpush1.bf16.msra.mxu0 %v553
    %573 = vmatprep.subr.bf16.mxu0 0
    %574 = vmatpush1.bf16.msra.mxu0 %v552
    %575 = vmatprep.subr.bf16.mxu0 0
    %576 = vmatpush1.bf16.msra.mxu0 %v551
    %577 = vmatprep.subr.bf16.mxu0 0
    %578 = vmatpush1.bf16.msra.mxu0 %v550
    %579 = vmatprep.subr.bf16.mxu0 0
    %580 = vmatpush1.bf16.msra.mxu0 %v549
    %581 = vmatprep.subr.bf16.mxu0 0
    %582 = vmatpush2.bf16.msra.mxu0 0
    %583 = vmatprep.subr.bf16.mxu0 0
    %584 = vmatpush2.bf16.msra.mxu0 0
    %585 = vmatprep.subr.bf16.mxu0 0
    %586 = vmatpush2.bf16.msra.mxu0 0
    %587 = vmatprep.subr.bf16.mxu0 0
    %588 = vmatpush2.bf16.msra.mxu0 0
    %589 = vmatprep.subr.bf16.mxu0 0
    %590 = vmatpush2.bf16.msra.mxu0 0
    %591 = vmatprep.subr.bf16.mxu0 0
    %592 = vmatpush2.bf16.msra.mxu0 0
    %593 = vmatprep.subr.bf16.mxu0 0
    %594 = vmatpush2.bf16.msra.mxu0 0
    %595 = vmatprep.subr.bf16.mxu0 0
    %596 = vmatpush2.bf16.msra.mxu0 0
    %597 = vmatprep.mubr.bf16.mxu0 0
    %598 = vmatmul.mubr.bf16.gmra.mxu0 %v512
    %v599 = vpop.f32.mrf.mxu0
    %v600 = vadd.f32 %v516, %v599
    %v601 = vpop.f32.mrf.mxu0
    %v602 = vpop.f32.mrf.mxu0
    %v603 = vpop.f32.mrf.mxu0
    %604 = vdwg.mxu0
    %v605 = vmax.f32 %v600, 0.0
    %v606 = vand.u32 2147483647, %v600
    %v607 = vsub.f32 0.0, %v606
    %v608 = vmul.f32 %v607, 1.442695
    %v609 = vpow.pop %v608
    %v610 = vadd.f32 %v609, 1.0
    %v611 = vlog2.pop %v610
    %v612 = vmul.f32 %v611, 0.6931472
    %v613 = vmul.f32 -0.5, %v609
    %v614 = vadd.f32 %v613, 1.0
    %v615 = vmul.f32 %v614, %v609
    %v616 = vand.u32 2147483647, %v609
    %vm617 = vcmp.lt.f32.partialorder %v616, 0.0004427343
    %v618 = vsel %vm617, %v615, %v612
    %v619 = vadd.f32 %v605, %v618
    %620 = vst [vmem:[#allocation8] sm:$0xff] %v619
    // Predicated region
    $region26: #{tpu_custom_call.1} parent=1 // pred_check
      _
    $region27: #{tpu_custom_call.1} parent=1 // pred_check_branch
      %622 = sbr.rel (0) target = $region29
    $region28: #{tpu_custom_call.1} parent=1 // pred_region
      %s624 = ssub.s32 128, 128
      %625 = vsyncadd [#allocation4], %s624
      %s627 = sshll.u32 [#allocation8], 4
      %s628 = int_to_ptr.vmem [resolvable:$true] %s627
      %630 = dma.vmem_to_hbm [thread:$0]  %s628, 128, %s3, [#allocation4]
    $region29: #{tpu_custom_call.1} parent=1 // pred_fallthru
      _
    // Predicated region
    $region30: #{tpu_custom_call.1} parent=1 // pred_check
      _
    $region31: #{tpu_custom_call.1} parent=1 // pred_check_branch
      %632 = sbr.rel (0) target = $region33
    $region32: #{tpu_custom_call.1} parent=1 // pred_region
      %633 = dma.done [#allocation4], 128
    $region33: #{tpu_custom_call.1} parent=1 // pred_fallthru
      _
    %634 = vsyncpa [#allocation3], 1
    %635 = vsyncpa [#allocation6], 1
    %636 = vsyncpa [#allocation4], 1

</llo_original>
